<compile_context>
chip_gen: v7x
topology: tpu7x:2x2x1
jax: 0.10.0
libtpu: 0.0.40
codegen_flags: <defaults>
</compile_context>

<pallas_src>
import math

import jax
import jax.numpy as jnp
from jax import lax
from jax.experimental import pallas as pl
from jax.experimental.pallas import tpu as pltpu

_INV_SQRT2 = 0.7071067811865476


def _mlp_kernel_f32out(x_ref, w1_ref, b1_ref, w2_ref, b2_ref, o_ref):
    """Grid (row tiles, HID tiles).  Output block index is constant across the
    HID axis, so the f32 output block itself is the accumulator (no scratch)."""
    k = pl.program_id(1)

    @pl.when(k == 0)
    def _init():
        # Seed the accumulator with the fc2 bias; partial sums add onto it.
        o_ref[...] = jnp.broadcast_to(b2_ref[...], o_ref.shape).astype(o_ref.dtype)

    # fc1 chunk: (tm, IN) @ (IN, tk) -> f32, + bias, exact erf-GELU
    # (torch nn.GELU default), evaluated in f32.
    h = jnp.dot(x_ref[...], w1_ref[...], preferred_element_type=jnp.float32)
    h = h + b1_ref[...]
    h = 0.5 * h * (1.0 + lax.erf(h * _INV_SQRT2))

    # fc2 partial: (tm, tk) @ (tk, OUT) accumulated into the resident f32 output.
    o_ref[...] += jnp.dot(h.astype(w2_ref.dtype), w2_ref[...],
                          preferred_element_type=jnp.float32)


def _mlp_kernel_scratch(x_ref, w1_ref, b1_ref, w2_ref, b2_ref, o_ref, acc_ref):
    """Variant with a separate f32 VMEM accumulator for non-f32 output dtypes."""
    k = pl.program_id(1)

    @pl.when(k == 0)
    def _init():
        acc_ref[...] = jnp.zeros_like(acc_ref)

    h = jnp.dot(x_ref[...], w1_ref[...], preferred_element_type=jnp.float32)
    h = h + b1_ref[...]
    h = 0.5 * h * (1.0 + lax.erf(h * _INV_SQRT2))
    acc_ref[...] += jnp.dot(h.astype(w2_ref.dtype), w2_ref[...],
                            preferred_element_type=jnp.float32)

    @pl.when(k == pl.num_programs(1) - 1)
    def _finalize():
        o_ref[...] = (acc_ref[...] + b2_ref[...]).astype(o_ref.dtype)


def _round_up(x, m):
    return ((x + m - 1) // m) * m


def _vmem_budget_bytes():
    """Generation-aware VMEM cap with ~20% headroom for Mosaic internal scratch,
    DMA descriptors and semaphores (v7x 64 MiB -> ~51 MiB; v5e/v6e 128 -> ~102)."""
    try:
        cap = int(pltpu.get_tpu_info().vmem_capacity_bytes)
    except Exception:
        cap = 64 << 20  # conservative: assume v7x-sized per-core VMEM
    return max(int(cap * 0.8), 16 << 20)


def _tile_footprint_bytes(tm, tk, IN, OUT, xsz, wsz, osz, use_scratch):
    """Double-buffered input/output blocks (+ resident f32 scratch if used)."""
    buffered = 2 * (tm * IN * xsz + IN * tk * wsz + tk * 4
                    + tk * OUT * wsz + OUT * 4 + tm * OUT * osz)
    return buffered + (tm * OUT * 4 if use_scratch else 0)


def mlp_pallas(x, w1, b1, w2, b2, *, compute_dtype=jnp.bfloat16,
               out_dtype=None, tm=None, tk=None):
    """Fused fc1 -> exact-erf GELU -> fc2.

    x: [M, IN]; w1: [IN, HID]; b1: [HID]; w2: [HID, OUT]; b2: [OUT].
    Store weights at rest in `compute_dtype` (bf16 by default) so the kernel
    streams them from HBM without a per-call wrapper cast.
    """
    M, IN = x.shape
    HID = w1.shape[1]
    OUT = w2.shape[1]
    if out_dtype is None:
        out_dtype = x.dtype  # captured before any compute-dtype cast

    # Cast only when the caller did not already provide compute-dtype operands.
    if compute_dtype is not None:
        if x.dtype != compute_dtype:
            x = x.astype(compute_dtype)
        if w1.dtype != compute_dtype:
            w1 = w1.astype(compute_dtype)
        if w2.dtype != compute_dtype:
            w2 = w2.astype(compute_dtype)

    # Biases stay f32 (added to f32 accumulators; negligible size).
    b1f = b1.astype(jnp.float32)
    b2f = b2.astype(jnp.float32)

    xsz = jnp.dtype(x.dtype).itemsize
    wsz = jnp.dtype(w1.dtype).itemsize
    osz = jnp.dtype(out_dtype).itemsize
    use_scratch = jnp.dtype(out_dtype) != jnp.float32
    vmem_cap = _vmem_budget_bytes()

    # ---- HID (reduction) tile: 128-multiples; pad HID when it isn't round. ----
    if tk is None:
        if HID < 128:
            tk = HID  # full-dim block (allowed by the (8,128) rule)
        else:
            hid_padded = _round_up(HID, 128)
            tk = next(c for c in (512, 256, 128) if hid_padded % c == 0)
    HIDp = HID if HID % tk == 0 else _round_up(HID, tk)

    # ---- Row tile: largest candidate that fits the VMEM budget; pad M. ----
    if tm is None:
        tm = None
        for c in (1024, 768, 512, 256, 128, 64, 32, 16, 8):
            if c <= M and (_tile_footprint_bytes(c, tk, IN, OUT, xsz, wsz, osz,
                                                 use_scratch) + (4 << 20)
                           <= vmem_cap):
                tm = c
                break
        if tm is None:
            tm = min(M, 8) if M > 0 else 1
    Mp = M if M % tm == 0 else _round_up(M, tm)

    # Zero-pad to the tile plan (zeros are exact no-ops through both matmuls:
    # padded w2 rows are zero, so padded hidden columns contribute nothing).
    if Mp != M:
        x = jnp.pad(x, ((0, Mp - M), (0, 0)))
    if HIDp != HID:
        w1 = jnp.pad(w1, ((0, 0), (0, HIDp - HID)))
        b1f = jnp.pad(b1f, (0, HIDp - HID))
        w2 = jnp.pad(w2, ((0, HIDp - HID), (0, 0)))

    b1_2d = b1f.reshape(1, HIDp)
    b2_2d = b2f.reshape(1, OUT)

    grid = (Mp // tm, HIDp // tk)
    n_row_tiles = grid[0]

    footprint = _tile_footprint_bytes(tm, tk, IN, OUT, xsz, wsz, osz, use_scratch)
    vmem_limit = int(min(max(footprint + (4 << 20), 32 << 20), vmem_cap))

    cost = pl.CostEstimate(
        flops=2 * Mp * IN * HIDp + 2 * Mp * HIDp * OUT + 8 * Mp * HIDp,
        transcendentals=Mp * HIDp,
        # Weights/biases are re-streamed once per row tile.
        bytes_accessed=(Mp * IN * xsz
                        + n_row_tiles * (IN * HIDp * wsz + HIDp * 4
                                         + HIDp * OUT * wsz + OUT * 4)
                        + Mp * OUT * osz),
    )

    in_specs = [
        pl.BlockSpec((tm, IN), lambda i, k: (i, 0)),    # x rows
        pl.BlockSpec((IN, tk), lambda i, k: (0, k)),    # w1 HID-slab
        pl.BlockSpec((1, tk), lambda i, k: (0, k)),     # b1 HID-slab
        pl.BlockSpec((tk, OUT), lambda i, k: (k, 0)),   # w2 HID-slab
        pl.BlockSpec((1, OUT), lambda i, k: (0, 0)),    # b2 (grid-invariant)
    ]
    out_spec = pl.BlockSpec((tm, OUT), lambda i, k: (i, 0))

    if use_scratch:
        kernel = _mlp_kernel_scratch
        scratch_shapes = [pltpu.VMEM((tm, OUT), jnp.float32)]
    else:
        kernel = _mlp_kernel_f32out
        scratch_shapes = []

    out = pl.pallas_call(
        kernel,
        out_shape=jax.ShapeDtypeStruct((Mp, OUT), out_dtype),
        grid=grid,
        in_specs=in_specs,
        out_specs=out_spec,
        scratch_shapes=scratch_shapes,
        compiler_params=pltpu.CompilerParams(
            dimension_semantics=("parallel", "arbitrary"),
            vmem_limit_bytes=vmem_limit,
        ),
        cost_estimate=cost,
    )(x, w1, b1_2d, w2, b2_2d)

    return out[:M] if Mp != M else out


if __name__ == "__main__":
    # Module hyperparameters (small, consistent with an attention-block MLP).
    in_features, hidden_features, out_features = 32, 64, 32
    batch, seq = 2, 8

    key = jax.random.PRNGKey(0)
    kx, kw1, kb1, kw2, kb2 = jax.random.split(key, 5)

    # Deterministic parameter init (PyTorch nn.Linear-like uniform bounds),
    # stored directly in [in, out] layout (transpose of torch's [out, in]).
    bound1 = 1.0 / math.sqrt(in_features)
    bound2 = 1.0 / math.sqrt(hidden_features)
    w1 = jax.random.uniform(kw1, (in_features, hidden_features),
                            jnp.float32, -bound1, bound1)
    b1 = jax.random.uniform(kb1, (hidden_features,), jnp.float32, -bound1, bound1)
    w2 = jax.random.uniform(kw2, (hidden_features, out_features),
                            jnp.float32, -bound2, bound2)
    b2 = jax.random.uniform(kb2, (out_features,), jnp.float32, -bound2, bound2)

    x = jax.random.normal(kx, (batch, seq, in_features), jnp.float32)
    x2d = x.reshape(batch * seq, in_features)

    # Pure-JAX reference (exact-erf GELU, matching torch's nn.GELU default).
    h_ref = x2d @ w1 + b1
    h_ref = 0.5 * h_ref * (1.0 + lax.erf(h_ref * _INV_SQRT2))
    ref = (h_ref @ w2 + b2).reshape(batch, seq, out_features)

    # f32 operand path (exact-tolerance check); toy M=16 -> single grid step.
    out2d = mlp_pallas(x2d, w1, b1, w2, b2, compute_dtype=jnp.float32)
    out = out2d.reshape(batch, seq, out_features)
    jax.block_until_ready(out)
    assert jnp.allclose(out, ref, atol=1e-5, rtol=1e-5), "f32 mismatch vs reference"

    # Default bf16 operand path: weights stored bf16-at-rest, f32 MXU
    # accumulation in-kernel, f32 output (out dtype follows the original x dtype).
    w1_bf = w1.astype(jnp.bfloat16)
    w2_bf = w2.astype(jnp.bfloat16)
    out2d_bf16 = mlp_pallas(x2d, w1_bf, b1, w2_bf, b2)   # compute_dtype=bf16 default
    out_bf16 = out2d_bf16.reshape(batch, seq, out_features)
    jax.block_until_ready(out_bf16)
    assert jnp.allclose(out_bf16, ref, atol=5e-2, rtol=5e-2), "bf16 mismatch vs reference"

    print("KERNEL_OK")
</pallas_src>

<mosaic_0001>
module attributes {stable_mosaic.version = 11 : i64} {
  func.func @_mlp_kernel_f32out(%arg0: i32, %arg1: i32, %arg2: memref<16x32xf32, #tpu.memory_space<vmem>>, %arg3: memref<32x64xf32, #tpu.memory_space<vmem>>, %arg4: memref<1x64xf32, #tpu.memory_space<vmem>>, %arg5: memref<64x32xf32, #tpu.memory_space<vmem>>, %arg6: memref<1x32xf32, #tpu.memory_space<vmem>>, %arg7: memref<16x32xf32, #tpu.memory_space<vmem>>) attributes {dimension_semantics = [#tpu.dimension_semantics<parallel>, #tpu.dimension_semantics<arbitrary>], iteration_bounds = array<i64: 1, 1>, scalar_prefetch = 0 : i64, scratch_operands = 0 : i64, tpu.core_type = #tpu.core_type<tc>, window_params = [{transform_indices = @transform_0, window_bounds = array<i64: 16, 32>}, {transform_indices = @transform_1, window_bounds = array<i64: 32, 64>}, {transform_indices = @transform_2, window_bounds = array<i64: 1, 64>}, {transform_indices = @transform_3, window_bounds = array<i64: 64, 32>}, {pipeline_mode = #tpu.pipeline_mode<synchronous>, transform_indices = @transform_4, window_bounds = array<i64: 1, 32>}, {transform_indices = @transform_5, window_bounds = array<i64: 16, 32>}]} {
    %c0_i32 = arith.constant 0 : i32
    %0 = arith.cmpi eq, %arg1, %c0_i32 : i32
    %1 = arith.extui %0 : i1 to i32
    %c0_i32_0 = arith.constant 0 : i32
    %2 = arith.cmpi ne, %1, %c0_i32_0 : i32
    scf.if %2 {
      %c0_16 = arith.constant 0 : index
      %c0_17 = arith.constant 0 : index
      %22 = vector.load %arg6[%c0_16, %c0_17] : memref<1x32xf32, #tpu.memory_space<vmem>>, vector<1x32xf32>
      %23 = vector.shape_cast %22 : vector<1x32xf32> to vector<1x32xf32>
      %24 = vector.broadcast %23 : vector<1x32xf32> to vector<16x32xf32>
      %c0_18 = arith.constant 0 : index
      %c0_19 = arith.constant 0 : index
      %25 = vector.load %arg7[%c0_18, %c0_19] : memref<16x32xf32, #tpu.memory_space<vmem>>, vector<16x32xf32>
      tpu.vector_store %arg7[%c0_18, %c0_19], %24 {strides = array<i32>} : memref<16x32xf32, #tpu.memory_space<vmem>>, vector<16x32xf32>,
    } else {
    }
    %c0 = arith.constant 0 : index
    %c0_1 = arith.constant 0 : index
    %3 = vector.load %arg2[%c0, %c0_1] : memref<16x32xf32, #tpu.memory_space<vmem>>, vector<16x32xf32>
    %c0_2 = arith.constant 0 : index
    %c0_3 = arith.constant 0 : index
    %4 = vector.load %arg3[%c0_2, %c0_3] : memref<32x64xf32, #tpu.memory_space<vmem>>, vector<32x64xf32>
    %cst = arith.constant dense<0.000000e+00> : vector<16x64xf32>
    %5 = tpu.matmul %3, %4, %cst {dimension_numbers = #tpu.dot_dimension_numbers<[1], [0], [0], [1], [0, 0, 1, 1], [], []>} : vector<16x32xf32>, vector<32x64xf32>, vector<16x64xf32> -> vector<16x64xf32>
    %c0_4 = arith.constant 0 : index
    %c0_5 = arith.constant 0 : index
    %6 = vector.load %arg4[%c0_4, %c0_5] : memref<1x64xf32, #tpu.memory_space<vmem>>, vector<1x64xf32>
    %7 = vector.broadcast %6 : vector<1x64xf32> to vector<16x64xf32>
    %8 = arith.addf %5, %7 : vector<16x64xf32>
    %cst_6 = arith.constant 5.000000e-01 : f32
    %9 = vector.broadcast %cst_6 : f32 to vector<16x64xf32>
    %10 = arith.mulf %9, %8 : vector<16x64xf32>
    %cst_7 = arith.constant 0.707106769 : f32
    %11 = vector.broadcast %cst_7 : f32 to vector<16x64xf32>
    %12 = arith.mulf %8, %11 : vector<16x64xf32>
    %13 = math.erf %12 : vector<16x64xf32>
    %cst_8 = arith.constant 1.000000e+00 : f32
    %14 = vector.broadcast %cst_8 : f32 to vector<16x64xf32>
    %15 = arith.addf %14, %13 : vector<16x64xf32>
    %16 = arith.mulf %10, %15 : vector<16x64xf32>
    %c0_9 = arith.constant 0 : index
    %c0_10 = arith.constant 0 : index
    %17 = vector.load %arg7[%c0_9, %c0_10] : memref<16x32xf32, #tpu.memory_space<vmem>>, vector<16x32xf32>
    %c0_11 = arith.constant 0 : index
    %c0_12 = arith.constant 0 : index
    %18 = vector.load %arg5[%c0_11, %c0_12] : memref<64x32xf32, #tpu.memory_space<vmem>>, vector<64x32xf32>
    %cst_13 = arith.constant dense<0.000000e+00> : vector<16x32xf32>
    %19 = tpu.matmul %16, %18, %cst_13 {dimension_numbers = #tpu.dot_dimension_numbers<[1], [0], [0], [1], [0, 0, 1, 1], [], []>} : vector<16x64xf32>, vector<64x32xf32>, vector<16x32xf32> -> vector<16x32xf32>
    %20 = arith.addf %17, %19 : vector<16x32xf32>
    %c0_14 = arith.constant 0 : index
    %c0_15 = arith.constant 0 : index
    %21 = vector.load %arg7[%c0_14, %c0_15] : memref<16x32xf32, #tpu.memory_space<vmem>>, vector<16x32xf32>
    tpu.vector_store %arg7[%c0_14, %c0_15], %20 {strides = array<i32>} : memref<16x32xf32, #tpu.memory_space<vmem>>, vector<16x32xf32>,
    return
  }
  func.func @transform_0(%arg0: i32, %arg1: i32) -> (i32, i32) {
    %c0_i32 = arith.constant 0 : i32
    %c0_i32_0 = arith.constant 0 : i32
    return %arg0, %c0_i32 : i32, i32
  }
  func.func @transform_1(%arg0: i32, %arg1: i32) -> (i32, i32) {
    %c0_i32 = arith.constant 0 : i32
    %c0_i32_0 = arith.constant 0 : i32
    return %c0_i32, %arg1 : i32, i32
  }
  func.func @transform_2(%arg0: i32, %arg1: i32) -> (i32, i32) {
    %c0_i32 = arith.constant 0 : i32
    %c0_i32_0 = arith.constant 0 : i32
    return %c0_i32, %arg1 : i32, i32
  }
  func.func @transform_3(%arg0: i32, %arg1: i32) -> (i32, i32) {
    %c0_i32 = arith.constant 0 : i32
    %c0_i32_0 = arith.constant 0 : i32
    return %arg1, %c0_i32 : i32, i32
  }
  func.func @transform_4(%arg0: i32, %arg1: i32) -> (i32, i32) {
    %c0_i32 = arith.constant 0 : i32
    %c0_i32_0 = arith.constant 0 : i32
    %c0_i32_1 = arith.constant 0 : i32
    return %c0_i32, %c0_i32_0 : i32, i32
  }
  func.func @transform_5(%arg0: i32, %arg1: i32) -> (i32, i32) {
    %c0_i32 = arith.constant 0 : i32
    %c0_i32_0 = arith.constant 0 : i32
    return %arg0, %c0_i32 : i32, i32
  }
}

</mosaic_0001>

<llo_original>
// kernel: tpu_custom_call.1
$region0: #{tpu_custom_call.1}
  #allocation0 [shape = 'u32[]', space=smem, size = 0x4, offset = 0x4, fixed_abs, tag = 'smem constant byte address 0x4 - core index']
  #allocation1 [shape = 'u32[144,128]{1,0:T(1,128)}', space=vmem, size = 0x12000, scoped, tag = 'internal scratch']
  %s0 = inlined_call_operand.vmem [shape: f32[16,32], index: 0, kind: input, shape index: {}]
  %s1 = inlined_call_operand.vmem [shape: f32[32,64], index: 1, kind: input, shape index: {}]
  %s2 = inlined_call_operand.vmem [shape: f32[1,64], index: 2, kind: input, shape index: {}]
  %s3 = inlined_call_operand.vmem [shape: f32[64,32], index: 3, kind: input, shape index: {}]
  %s4 = inlined_call_operand.vmem [shape: f32[1,32], index: 4, kind: input, shape index: {}]
  %s5 = inlined_call_operand.hbm [shape: f32[16,32], index: 5, kind: output, shape index: {}]
  %s6 = sld [smem:[#allocation0]]
  $region34: #{tpu_custom_call.1} parent=0
    _
  %s8 = ssub.s32 1, %s6
  %s9 = scalar_select 0, %s8, %s6
  $region1: #{tpu_custom_call.1} parent=0
    #allocation2 [shape = 'u8[8192]{0}', space=vmem, size = 0x2000, scoped, tag = 'output window, operand 0, single buffered']
    #allocation3 [shape = 's32[1]{0}', space=sflag, size = 0x4, scoped, tag = 'scoped memory for tpu_custom_call.1']
    %10 = vsyncpa [#allocation3], 0
    // Predicated region
    $region2: #{tpu_custom_call.1} parent=1 // pred_check
      _
    $region3: #{tpu_custom_call.1} parent=1 // pred_check_branch
      %12 = sbr.rel (0) target = $region5
    $region4: #{tpu_custom_call.1} parent=1 // pred_region
      _
    $region5: #{tpu_custom_call.1} parent=1 // pred_fallthru
      _
    // Predicated region
    $region6: #{tpu_custom_call.1} parent=1 // pred_check
      _
    $region7: #{tpu_custom_call.1} parent=1 // pred_check_branch
      %14 = sbr.rel (0) target = $region9
    $region8: #{tpu_custom_call.1} parent=1 // pred_region
      _
    $region9: #{tpu_custom_call.1} parent=1 // pred_fallthru
      _
    // Predicated region
    $region10: #{tpu_custom_call.1} parent=1 // pred_check
      _
    $region11: #{tpu_custom_call.1} parent=1 // pred_check_branch
      %16 = sbr.rel (0) target = $region13
    $region12: #{tpu_custom_call.1} parent=1 // pred_region
      _
    $region13: #{tpu_custom_call.1} parent=1 // pred_fallthru
      _
    // Predicated region
    $region14: #{tpu_custom_call.1} parent=1 // pred_check
      _
    $region15: #{tpu_custom_call.1} parent=1 // pred_check_branch
      %18 = sbr.rel (0) target = $region17
    $region16: #{tpu_custom_call.1} parent=1 // pred_region
      _
    $region17: #{tpu_custom_call.1} parent=1 // pred_fallthru
      _
    // Predicated region
    $region18: #{tpu_custom_call.1} parent=1 // pred_check
      _
    $region19: #{tpu_custom_call.1} parent=1 // pred_check_branch
      %20 = sbr.rel (0) target = $region21
    $region20: #{tpu_custom_call.1} parent=1 // pred_region
      _
    $region21: #{tpu_custom_call.1} parent=1 // pred_fallthru
      _
    %p21 = scmp.eq.s32.totalorder 0, 0
    // Predicated region
    $region22: #{tpu_custom_call.1} parent=1 // pred_check
      %p22 = pneg %p21
    $region23: #{tpu_custom_call.1} parent=1 // pred_check_branch
      %24 = sbr.rel (%p22) target = $region25
    $region24: #{tpu_custom_call.1} parent=1 // pred_region
      %v25 = vld [vmem:[%s4] sm:$0x1]
      %v27 = vlaneseq
      %v28 = vshrl.u32 %v27, 7
      %v29 = vsub.s32 0, %v28
      %v30 = vrot.slane %v25, %v29
      %vm32 = vcmask 261120
      %33 = vst.msk [vmem:[#allocation2] sm:$0xff] %vm32, %v30
      %34 = vst.msk [vmem:[#allocation2 + $0x8] sm:$0xff] %vm32, %v30
    $region25: #{tpu_custom_call.1} parent=1 // pred_fallthru
      _
    %v35 = vld [vmem:[%s0] sm:$0xff]
    %v36 = vld [vmem:[%s0 + $0x8] sm:$0xff]
    %v37 = vld [vmem:[%s1] sm:$0xff]
    %v38 = vld [vmem:[%s1 + $0x8] sm:$0xff]
    %v39 = vld [vmem:[%s1 + $0x10] sm:$0xff]
    %v40 = vld [vmem:[%s1 + $0x18] sm:$0xff]
    %v41 = vld [vmem:[%s2] sm:$0x1]
    %v43 = vlaneseq
    %v44 = vshrl.u32 %v43, 7
    %v45 = vsub.s32 0, %v44
    %v46 = vrot.slane %v41, %v45
    %vm48 = vcmask 261120
    %v50 = vsel %vm48, %v35, 0
    %v53 = vsel %vm48, %v36, 0
    %55 = vmatprep.subr.mxu0 0.0
    %56 = vmatpush1.msra.mxu0 %v37
    %57 = vmatprep.subr.mxu0 0.0
    %58 = vmatpush1.msra.mxu0 %v38
    %59 = vmatprep.subr.mxu0 0.0
    %60 = vmatpush1.msra.mxu0 %v39
    %61 = vmatprep.subr.mxu0 0.0
    %62 = vmatpush1.msra.mxu0 %v40
    %63 = vmatprep.subr.mxu0 0.0
    %64 = vmatpush1.msra.mxu0 0.0
    %65 = vmatprep.subr.mxu0 0.0
    %66 = vmatpush1.msra.mxu0 0.0
    %67 = vmatprep.subr.mxu0 0.0
    %68 = vmatpush1.msra.mxu0 0.0
    %69 = vmatprep.subr.mxu0 0.0
    %70 = vmatpush1.msra.mxu0 0.0
    %71 = vmatprep.subr.mxu0 0.0
    %72 = vmatpush1.msra.mxu0 0.0
    %73 = vmatprep.subr.mxu0 0.0
    %74 = vmatpush1.msra.mxu0 0.0
    %75 = vmatprep.subr.mxu0 0.0
    %76 = vmatpush1.msra.mxu0 0.0
    %77 = vmatprep.subr.mxu0 0.0
    %78 = vmatpush1.msra.mxu0 0.0
    %79 = vmatprep.subr.mxu0 0.0
    %80 = vmatpush1.msra.mxu0 0.0
    %81 = vmatprep.subr.mxu0 0.0
    %82 = vmatpush1.msra.mxu0 0.0
    %83 = vmatprep.subr.mxu0 0.0
    %84 = vmatpush1.msra.mxu0 0.0
    %85 = vmatprep.subr.mxu0 0.0
    %86 = vmatpush1.msra.mxu0 0.0
    %87 = vmatprep.subr.mxu0 0.0
    %88 = vmatpush1.msra.mxu0 0.0
    %89 = vmatprep.subr.mxu0 0.0
    %90 = vmatpush1.msra.mxu0 0.0
    %91 = vmatprep.subr.mxu0 0.0
    %92 = vmatpush1.msra.mxu0 0.0
    %93 = vmatprep.subr.mxu0 0.0
    %94 = vmatpush1.msra.mxu0 0.0
    %95 = vmatprep.subr.mxu0 0.0
    %96 = vmatpush1.msra.mxu0 0.0
    %97 = vmatprep.subr.mxu0 0.0
    %98 = vmatpush1.msra.mxu0 0.0
    %99 = vmatprep.subr.mxu0 0.0
    %100 = vmatpush1.msra.mxu0 0.0
    %101 = vmatprep.subr.mxu0 0.0
    %102 = vmatpush1.msra.mxu0 0.0
    %103 = vmatprep.subr.mxu0 0.0
    %104 = vmatpush1.msra.mxu0 0.0
    %105 = vmatprep.subr.mxu0 0.0
    %106 = vmatpush1.msra.mxu0 0.0
    %107 = vmatprep.subr.mxu0 0.0
    %108 = vmatpush1.msra.mxu0 0.0
    %109 = vmatprep.subr.mxu0 0.0
    %110 = vmatpush1.msra.mxu0 0.0
    %111 = vmatprep.subr.mxu0 0.0
    %112 = vmatpush1.msra.mxu0 0.0
    %113 = vmatprep.subr.mxu0 0.0
    %114 = vmatpush1.msra.mxu0 0.0
    %115 = vmatprep.subr.mxu0 0.0
    %116 = vmatpush1.msra.mxu0 0.0
    %117 = vmatprep.subr.mxu0 0.0
    %118 = vmatpush1.msra.mxu0 0.0
    %119 = vmatprep.mubr.f32.mxu0 0.0
    %120 = vmatmul.mubr.f32.gmra.mrb[0].mxu0 %v50
    %v121 = vpop.f32.mrb[0].mxu0
    %v122 = vadd.f32 %v46, %v121
    %v123 = vpop.f32.mrb[0].mxu0
    %124 = vmatprep.mubr.f32.mxu0 0.0
    %125 = vmatmul.mubr.f32.gmra.mrb[0].mxu0 %v53
    %v126 = vpop.f32.mrb[0].mxu0
    %v127 = vadd.f32 %v46, %v126
    %v128 = vpop.f32.mrb[0].mxu0
    %129 = vdwg.mxu0
    %v130 = vmul.f32 %v122, 0.5
    %v131 = vmul.f32 %v127, 0.5
    %v132 = vmul.f32 %v122, 0.70710677
    %v133 = vmul.f32 %v127, 0.70710677
    %v134 = verf.f32.pop %v132
    %v135 = verf.f32.pop %v133
    %v136 = vadd.f32 %v134, 1.0
    %v137 = vadd.f32 %v135, 1.0
    %v138 = vmul.f32 %v130, %v136
    %v139 = vmul.f32 %v131, %v137
    %v140 = vld [vmem:[#allocation2] sm:$0xff]
    %v141 = vld [vmem:[#allocation2 + $0x8] sm:$0xff]
    %v142 = vld [vmem:[%s3] sm:$0xff]
    %v143 = vld [vmem:[%s3 + $0x8] sm:$0xff]
    %v144 = vld [vmem:[%s3 + $0x10] sm:$0xff]
    %v145 = vld [vmem:[%s3 + $0x18] sm:$0xff]
    %v146 = vld [vmem:[%s3 + $0x20] sm:$0xff]
    %v147 = vld [vmem:[%s3 + $0x28] sm:$0xff]
    %v148 = vld [vmem:[%s3 + $0x30] sm:$0xff]
    %v149 = vld [vmem:[%s3 + $0x38] sm:$0xff]
    %vm150 = vcmask 523264
    %v152 = vsel %vm150, %v138, 0
    %v155 = vsel %vm150, %v139, 0
    %157 = vmatprep.subr.mxu0 0.0
    %158 = vmatpush1.msra.mxu0 %v142
    %159 = vmatprep.subr.mxu0 0.0
    %160 = vmatpush1.msra.mxu0 %v143
    %161 = vmatprep.subr.mxu0 0.0
    %162 = vmatpush1.msra.mxu0 %v144
    %163 = vmatprep.subr.mxu0 0.0
    %164 = vmatpush1.msra.mxu0 %v145
    %165 = vmatprep.subr.mxu0 0.0
    %166 = vmatpush1.msra.mxu0 %v146
    %167 = vmatprep.subr.mxu0 0.0
    %168 = vmatpush1.msra.mxu0 %v147
    %169 = vmatprep.subr.mxu0 0.0
    %170 = vmatpush1.msra.mxu0 %v148
    %171 = vmatprep.subr.mxu0 0.0
    %172 = vmatpush1.msra.mxu0 %v149
    %173 = vmatprep.subr.mxu0 0.0
    %174 = vmatpush1.msra.mxu0 0.0
    %175 = vmatprep.subr.mxu0 0.0
    %176 = vmatpush1.msra.mxu0 0.0
    %177 = vmatprep.subr.mxu0 0.0
    %178 = vmatpush1.msra.mxu0 0.0
    %179 = vmatprep.subr.mxu0 0.0
    %180 = vmatpush1.msra.mxu0 0.0
    %181 = vmatprep.subr.mxu0 0.0
    %182 = vmatpush1.msra.mxu0 0.0
    %183 = vmatprep.subr.mxu0 0.0
    %184 = vmatpush1.msra.mxu0 0.0
    %185 = vmatprep.subr.mxu0 0.0
    %186 = vmatpush1.msra.mxu0 0.0
    %187 = vmatprep.subr.mxu0 0.0
    %188 = vmatpush1.msra.mxu0 0.0
    %189 = vmatprep.subr.mxu0 0.0
    %190 = vmatpush1.msra.mxu0 0.0
    %191 = vmatprep.subr.mxu0 0.0
    %192 = vmatpush1.msra.mxu0 0.0
    %193 = vmatprep.subr.mxu0 0.0
    %194 = vmatpush1.msra.mxu0 0.0
    %195 = vmatprep.subr.mxu0 0.0
    %196 = vmatpush1.msra.mxu0 0.0
    %197 = vmatprep.subr.mxu0 0.0
    %198 = vmatpush1.msra.mxu0 0.0
    %199 = vmatprep.subr.mxu0 0.0
    %200 = vmatpush1.msra.mxu0 0.0
    %201 = vmatprep.subr.mxu0 0.0
    %202 = vmatpush1.msra.mxu0 0.0
    %203 = vmatprep.subr.mxu0 0.0
    %204 = vmatpush1.msra.mxu0 0.0
    %205 = vmatprep.subr.mxu0 0.0
    %206 = vmatpush1.msra.mxu0 0.0
    %207 = vmatprep.subr.mxu0 0.0
    %208 = vmatpush1.msra.mxu0 0.0
    %209 = vmatprep.subr.mxu0 0.0
    %210 = vmatpush1.msra.mxu0 0.0
    %211 = vmatprep.subr.mxu0 0.0
    %212 = vmatpush1.msra.mxu0 0.0
    %213 = vmatprep.subr.mxu0 0.0
    %214 = vmatpush1.msra.mxu0 0.0
    %215 = vmatprep.subr.mxu0 0.0
    %216 = vmatpush1.msra.mxu0 0.0
    %217 = vmatprep.subr.mxu0 0.0
    %218 = vmatpush1.msra.mxu0 0.0
    %219 = vmatprep.subr.mxu0 0.0
    %220 = vmatpush1.msra.mxu0 0.0
    %221 = vmatprep.mubr.f32.mxu0 0.0
    %222 = vmatmul.mubr.f32.gmra.mrb[0].mxu0 %v152
    %v223 = vpop.f32.mrb[0].mxu0
    %v224 = vadd.f32 0.0, %v223
    %v225 = vpop.f32.mrb[0].mxu0
    %226 = vmatprep.mubr.f32.mxu0 0.0
    %227 = vmatmul.mubr.f32.gmra.mrb[0].mxu0 %v155
    %v228 = vpop.f32.mrb[0].mxu0
    %v229 = vadd.f32 0.0, %v228
    %v230 = vpop.f32.mrb[0].mxu0
    %231 = vdwg.mxu0
    %v232 = vadd.f32 %v140, %v224
    %v233 = vadd.f32 %v141, %v229
    %234 = vst.msk [vmem:[#allocation2] sm:$0xff] %vm48, %v232
    %235 = vst.msk [vmem:[#allocation2 + $0x8] sm:$0xff] %vm48, %v233
    // Predicated region
    $region26: #{tpu_custom_call.1} parent=1 // pred_check
      _
    $region27: #{tpu_custom_call.1} parent=1 // pred_check_branch
      %237 = sbr.rel (0) target = $region29
    $region28: #{tpu_custom_call.1} parent=1 // pred_region
      %s239 = ssub.s32 256, 256
      %240 = vsyncadd [#allocation3], %s239
      %s241 = sshll.u32 [#allocation2], 4
      %s242 = int_to_ptr.vmem [resolvable:$true] %s241
      %247 = dma.vmem_to_hbm [thread:$0]  %s242, 256, %s5, [#allocation3], 128, 128, 8
    $region29: #{tpu_custom_call.1} parent=1 // pred_fallthru
      _
    // Predicated region
    $region30: #{tpu_custom_call.1} parent=1 // pred_check
      _
    $region31: #{tpu_custom_call.1} parent=1 // pred_check_branch
      %249 = sbr.rel (0) target = $region33
    $region32: #{tpu_custom_call.1} parent=1 // pred_region
      %250 = dma.done [#allocation3], 256
    $region33: #{tpu_custom_call.1} parent=1 // pred_fallthru
      _
    %251 = vsyncpa [#allocation3], 1

</llo_original>
